<compile_context>
chip_gen: v7x
topology: tpu7x:2x2x1
jax: 0.10.0
libtpu: 0.0.40
codegen_flags: <defaults>
</compile_context>

<pallas_src>
import jax
import jax.numpy as jnp
from jax.experimental import pallas as pl
from jax.experimental.pallas import tpu as pltpu


def dpp_model_kernel(x_ref, wattn_ref, w1_ref, b1_ref, wfc_ref, bfc_ref,
                     logits_ref, alpha_ref):
    x = x_ref[...]                                   # (TB, S, D) f32
    w_attn = wattn_ref[...]                          # (1, D)

    # --- attention scores on the VPU + one lane (XLU) reduce ---------------
    scores = jnp.sum(x * w_attn[None, :, :], axis=-1)            # (TB, S)

    # --- numerically stable softmax over the sequence ----------------------
    m = jnp.max(scores, axis=-1, keepdims=True)
    e = jnp.exp(scores - m)                                       # EUP
    denom = jnp.sum(e, axis=-1, keepdims=True)
    inv = pl.reciprocal(denom, approx=True)                       # EUP slot
    inv = inv * (2.0 - denom * inv)                               # 1 Newton step -> ~f32 exact
    alphas = e * inv                                              # (TB, S)

    # --- weighted pooling on the VPU + sublane (XLU) reduce ----------------
    # (was a q=1 batched MXU einsum: TB serialized near-empty matmuls)
    context = jnp.sum(alphas[:, :, None] * x, axis=1)             # (TB, D)

    # --- DPP projection -> ReLU -> fc_out (MXU, f32 accumulation) ----------
    dpp_out = jnp.dot(context, w1_ref[...],
                      preferred_element_type=jnp.float32) + b1_ref[...]   # (TB, H)
    h = jnp.maximum(dpp_out, 0.0)                                         # ReLU
    logits = jnp.dot(h, wfc_ref[...],
                     preferred_element_type=jnp.float32) + bfc_ref[...]   # (TB, O)

    logits_ref[...] = logits
    alpha_ref[...] = alphas


def _choose_tb(B, S, D, O, dtype_bytes=4):
    """Pick a batch tile from a VMEM budget (double-buffered x tile + outputs)."""
    budget = 16 * 1024 * 1024            # conservative: ~half of v7x scoped VMEM
    per_row = (2 * S * D * dtype_bytes   # x tile, double-buffered
               + 2 * (O + S) * 4)        # logits + alpha output tiles
    cap = max(8, budget // max(per_row, 1))
    cap = min(cap, 256)                  # MXU M-height on v6e/v7x (128 fills v5e)
    if B <= cap:
        return B                         # whole batch in one block (full extent)
    tb = (cap // 8) * 8                  # sublane-aligned when actually tiling
    while tb > 8 and B % tb != 0:        # prefer a tile that divides B evenly
        tb -= 8
    return tb


def dpp_model_forward(x, w_attn, w1, b1, w_fc, b_fc):
    """Fused DPPModelBase forward; returns (logits (B,O), alphas (B,S))."""
    B, S, D = x.shape
    H = w1.shape[1]
    O = w_fc.shape[1]

    wa = jnp.reshape(w_attn, (1, D))
    b1_2d = jnp.reshape(b1, (1, H))
    bfc_2d = jnp.reshape(b_fc, (1, O))

    TB = _choose_tb(B, S, D, O)
    grid = (pl.cdiv(B, TB),)

    logits, alphas = pl.pallas_call(
        dpp_model_kernel,
        out_shape=(jax.ShapeDtypeStruct((B, O), jnp.float32),
                   jax.ShapeDtypeStruct((B, S), jnp.float32)),
        grid=grid,
        in_specs=[
            pl.BlockSpec((TB, S, D), lambda i: (i, 0, 0)),   # x batch tile (pipelined)
            pl.BlockSpec((1, D), lambda i: (0, 0)),          # attention weights
            pl.BlockSpec((D, H), lambda i: (0, 0)),          # W1
            pl.BlockSpec((1, H), lambda i: (0, 0)),          # b1
            pl.BlockSpec((H, O), lambda i: (0, 0)),          # W_fc
            pl.BlockSpec((1, O), lambda i: (0, 0)),          # b_fc
        ],
        out_specs=(
            pl.BlockSpec((TB, O), lambda i: (i, 0)),
            pl.BlockSpec((TB, S), lambda i: (i, 0)),
        ),
        compiler_params=pltpu.CompilerParams(
            dimension_semantics=("parallel",),               # megacore on v7x
        ),
    )(x, wa, w1, b1_2d, w_fc, bfc_2d)

    return logits, alphas


def dpp_model_reference(x, w_attn, w1, b1, w_fc, b_fc):
    """Plain-JAX reference mirroring the PyTorch forward semantics."""
    scores = jnp.sum(x * jnp.reshape(w_attn, (1, 1, -1)), axis=-1)   # (B, S)
    alphas = jax.nn.softmax(scores, axis=-1)
    context = jnp.einsum('bs,bsd->bd', alphas, x)                    # (B, D)
    dpp_out = context @ w1 + jnp.reshape(b1, (1, -1))
    h = jnp.maximum(dpp_out, 0.0)
    logits = h @ w_fc + jnp.reshape(b_fc, (1, -1))
    return logits, alphas


if __name__ == "__main__":
    # Small shapes consistent with the module: batch=2, seq=8, feature=32,
    # hidden_size_dpp=32, output_size=1 (sigmoid>0.5 in predict implies 1 logit).
    B, S, D, H, O = 2, 8, 32, 32, 1

    key = jax.random.PRNGKey(0)
    kx, ka, k1, kb1, kf, kbf = jax.random.split(key, 6)

    x      = jax.random.normal(kx, (B, S, D), dtype=jnp.float32)
    w_attn = jax.random.normal(ka, (D, 1), dtype=jnp.float32) * 0.1
    w1     = jax.random.normal(k1, (D, H), dtype=jnp.float32) * 0.1
    b1     = jax.random.normal(kb1, (1, H), dtype=jnp.float32) * 0.1
    w_fc   = jax.random.normal(kf, (H, O), dtype=jnp.float32) * 0.1
    b_fc   = jax.random.normal(kbf, (1, O), dtype=jnp.float32) * 0.1

    logits, alphas = dpp_model_forward(x, w_attn, w1, b1, w_fc, b_fc)
    jax.block_until_ready((logits, alphas))

    ref_logits, ref_alphas = dpp_model_reference(x, w_attn, w1, b1, w_fc, b_fc)
    assert logits.shape == (B, O) and alphas.shape == (B, S)
    # alphas: pure VPU/EUP math, tight tolerance (Newton step keeps f32 accuracy).
    assert jnp.allclose(alphas, ref_alphas, atol=1e-5, rtol=1e-5)
    # logits: goes through MXU contractions; allow for accumulation-order /
    # matmul-rounding differences between the Mosaic and XLA f32 dot paths.
    assert jnp.allclose(logits, ref_logits, atol=1e-4, rtol=1e-4)

    print("KERNEL_OK")
</pallas_src>

<mosaic_0001>
module attributes {stable_mosaic.version = 11 : i64} {
  func.func @dpp_model_kernel(%arg0: i32, %arg1: memref<2x8x32xf32, #tpu.memory_space<vmem>>, %arg2: memref<1x32xf32, #tpu.memory_space<vmem>>, %arg3: memref<32x32xf32, #tpu.memory_space<vmem>>, %arg4: memref<1x32xf32, #tpu.memory_space<vmem>>, %arg5: memref<32x1xf32, #tpu.memory_space<vmem>>, %arg6: memref<1x1xf32, #tpu.memory_space<vmem>>, %arg7: memref<2x1xf32, #tpu.memory_space<vmem>>, %arg8: memref<2x8xf32, #tpu.memory_space<vmem>>) attributes {dimension_semantics = [#tpu.dimension_semantics<parallel>], iteration_bounds = array<i64: 1>, scalar_prefetch = 0 : i64, scratch_operands = 0 : i64, tpu.core_type = #tpu.core_type<tc>, window_params = [{transform_indices = @transform_0, window_bounds = array<i64: 2, 8, 32>}, {pipeline_mode = #tpu.pipeline_mode<synchronous>, transform_indices = @transform_1, window_bounds = array<i64: 1, 32>}, {pipeline_mode = #tpu.pipeline_mode<synchronous>, transform_indices = @transform_2, window_bounds = array<i64: 32, 32>}, {pipeline_mode = #tpu.pipeline_mode<synchronous>, transform_indices = @transform_3, window_bounds = array<i64: 1, 32>}, {pipeline_mode = #tpu.pipeline_mode<synchronous>, transform_indices = @transform_4, window_bounds = array<i64: 32, 1>}, {pipeline_mode = #tpu.pipeline_mode<synchronous>, transform_indices = @transform_5, window_bounds = array<i64: 1, 1>}, {transform_indices = @transform_6, window_bounds = array<i64: 2, 1>}, {transform_indices = @transform_7, window_bounds = array<i64: 2, 8>}]} {
    %c0 = arith.constant 0 : index
    %c0_0 = arith.constant 0 : index
    %c0_1 = arith.constant 0 : index
    %0 = vector.load %arg1[%c0, %c0_0, %c0_1] : memref<2x8x32xf32, #tpu.memory_space<vmem>>, vector<2x8x32xf32>
    %c0_2 = arith.constant 0 : index
    %c0_3 = arith.constant 0 : index
    %1 = vector.load %arg2[%c0_2, %c0_3] : memref<1x32xf32, #tpu.memory_space<vmem>>, vector<1x32xf32>
    %2 = vector.shape_cast %1 : vector<1x32xf32> to vector<1x1x32xf32>
    %3 = vector.broadcast %2 : vector<1x1x32xf32> to vector<2x8x32xf32>
    %4 = arith.mulf %0, %3 : vector<2x8x32xf32>
    %cst = arith.constant dense<0.000000e+00> : vector<2x8xf32>
    %5 = vector.multi_reduction <add>, %4, %cst [2] : vector<2x8x32xf32> to vector<2x8xf32>
    %cst_4 = arith.constant dense<0xFF800000> : vector<2xf32>
    %6 = vector.multi_reduction <maximumf>, %5, %cst_4 [1] : vector<2x8xf32> to vector<2xf32>
    %7 = vector.shape_cast %6 : vector<2xf32> to vector<2x1xf32>
    %8 = vector.broadcast %7 : vector<2x1xf32> to vector<2x8xf32>
    %9 = arith.subf %5, %8 : vector<2x8xf32>
    %10 = math.exp %9 : vector<2x8xf32>
    %cst_5 = arith.constant dense<0.000000e+00> : vector<2xf32>
    %11 = vector.multi_reduction <add>, %10, %cst_5 [1] : vector<2x8xf32> to vector<2xf32>
    %12 = vector.shape_cast %11 : vector<2xf32> to vector<2x1xf32>
    %13 = tpu.reciprocal %12 {approx = true} : vector<2x1xf32> -> vector<2x1xf32>
    %14 = arith.mulf %12, %13 : vector<2x1xf32>
    %cst_6 = arith.constant 2.000000e+00 : f32
    %15 = vector.broadcast %cst_6 : f32 to vector<2x1xf32>
    %16 = arith.subf %15, %14 : vector<2x1xf32>
    %17 = arith.mulf %13, %16 : vector<2x1xf32>
    %18 = vector.broadcast %17 : vector<2x1xf32> to vector<2x8xf32>
    %19 = arith.mulf %10, %18 : vector<2x8xf32>
    %20 = vector.shape_cast %19 : vector<2x8xf32> to vector<2x8x1xf32>
    %21 = vector.broadcast %20 : vector<2x8x1xf32> to vector<2x8x32xf32>
    %22 = arith.mulf %21, %0 : vector<2x8x32xf32>
    %cst_7 = arith.constant dense<0.000000e+00> : vector<2x32xf32>
    %23 = vector.multi_reduction <add>, %22, %cst_7 [1] : vector<2x8x32xf32> to vector<2x32xf32>
    %c0_8 = arith.constant 0 : index
    %c0_9 = arith.constant 0 : index
    %24 = vector.load %arg3[%c0_8, %c0_9] : memref<32x32xf32, #tpu.memory_space<vmem>>, vector<32x32xf32>
    %cst_10 = arith.constant dense<0.000000e+00> : vector<2x32xf32>
    %25 = tpu.matmul %23, %24, %cst_10 {dimension_numbers = #tpu.dot_dimension_numbers<[1], [0], [0], [1], [0, 0, 1, 1], [], []>} : vector<2x32xf32>, vector<32x32xf32>, vector<2x32xf32> -> vector<2x32xf32>
    %c0_11 = arith.constant 0 : index
    %c0_12 = arith.constant 0 : index
    %26 = vector.load %arg4[%c0_11, %c0_12] : memref<1x32xf32, #tpu.memory_space<vmem>>, vector<1x32xf32>
    %27 = vector.broadcast %26 : vector<1x32xf32> to vector<2x32xf32>
    %28 = arith.addf %25, %27 : vector<2x32xf32>
    %cst_13 = arith.constant 0.000000e+00 : f32
    %29 = vector.broadcast %cst_13 : f32 to vector<2x32xf32>
    %30 = arith.maximumf %28, %29 : vector<2x32xf32>
    %c0_14 = arith.constant 0 : index
    %c0_15 = arith.constant 0 : index
    %31 = vector.load %arg5[%c0_14, %c0_15] : memref<32x1xf32, #tpu.memory_space<vmem>>, vector<32x1xf32>
    %cst_16 = arith.constant dense<0.000000e+00> : vector<2x1xf32>
    %32 = tpu.matmul %30, %31, %cst_16 {dimension_numbers = #tpu.dot_dimension_numbers<[1], [0], [0], [1], [0, 0, 1, 1], [], []>} : vector<2x32xf32>, vector<32x1xf32>, vector<2x1xf32> -> vector<2x1xf32>
    %c0_17 = arith.constant 0 : index
    %c0_18 = arith.constant 0 : index
    %33 = vector.load %arg6[%c0_17, %c0_18] : memref<1x1xf32, #tpu.memory_space<vmem>>, vector<1x1xf32>
    %34 = vector.broadcast %33 : vector<1x1xf32> to vector<2x1xf32>
    %35 = arith.addf %32, %34 : vector<2x1xf32>
    %c0_19 = arith.constant 0 : index
    %c0_20 = arith.constant 0 : index
    %36 = vector.load %arg7[%c0_19, %c0_20] : memref<2x1xf32, #tpu.memory_space<vmem>>, vector<2x1xf32>
    tpu.vector_store %arg7[%c0_19, %c0_20], %35 {strides = array<i32>} : memref<2x1xf32, #tpu.memory_space<vmem>>, vector<2x1xf32>,
    %c0_21 = arith.constant 0 : index
    %c0_22 = arith.constant 0 : index
    %37 = vector.load %arg8[%c0_21, %c0_22] : memref<2x8xf32, #tpu.memory_space<vmem>>, vector<2x8xf32>
    tpu.vector_store %arg8[%c0_21, %c0_22], %19 {strides = array<i32>} : memref<2x8xf32, #tpu.memory_space<vmem>>, vector<2x8xf32>,
    return
  }
  func.func @transform_0(%arg0: i32) -> (i32, i32, i32) {
    %c0_i32 = arith.constant 0 : i32
    %c0_i32_0 = arith.constant 0 : i32
    %c0_i32_1 = arith.constant 0 : i32
    return %arg0, %c0_i32, %c0_i32_0 : i32, i32, i32
  }
  func.func @transform_1(%arg0: i32) -> (i32, i32) {
    %c0_i32 = arith.constant 0 : i32
    %c0_i32_0 = arith.constant 0 : i32
    %c0_i32_1 = arith.constant 0 : i32
    return %c0_i32, %c0_i32_0 : i32, i32
  }
  func.func @transform_2(%arg0: i32) -> (i32, i32) {
    %c0_i32 = arith.constant 0 : i32
    %c0_i32_0 = arith.constant 0 : i32
    %c0_i32_1 = arith.constant 0 : i32
    return %c0_i32, %c0_i32_0 : i32, i32
  }
  func.func @transform_3(%arg0: i32) -> (i32, i32) {
    %c0_i32 = arith.constant 0 : i32
    %c0_i32_0 = arith.constant 0 : i32
    %c0_i32_1 = arith.constant 0 : i32
    return %c0_i32, %c0_i32_0 : i32, i32
  }
  func.func @transform_4(%arg0: i32) -> (i32, i32) {
    %c0_i32 = arith.constant 0 : i32
    %c0_i32_0 = arith.constant 0 : i32
    %c0_i32_1 = arith.constant 0 : i32
    return %c0_i32, %c0_i32_0 : i32, i32
  }
  func.func @transform_5(%arg0: i32) -> (i32, i32) {
    %c0_i32 = arith.constant 0 : i32
    %c0_i32_0 = arith.constant 0 : i32
    %c0_i32_1 = arith.constant 0 : i32
    return %c0_i32, %c0_i32_0 : i32, i32
  }
  func.func @transform_6(%arg0: i32) -> (i32, i32) {
    %c0_i32 = arith.constant 0 : i32
    %c0_i32_0 = arith.constant 0 : i32
    return %arg0, %c0_i32 : i32, i32
  }
  func.func @transform_7(%arg0: i32) -> (i32, i32) {
    %c0_i32 = arith.constant 0 : i32
    %c0_i32_0 = arith.constant 0 : i32
    return %arg0, %c0_i32 : i32, i32
  }
}

</mosaic_0001>

<llo_original>
// kernel: tpu_custom_call.1
$region0: #{tpu_custom_call.1}
  #allocation0 [shape = 'u32[]', space=smem, size = 0x4, offset = 0x4, fixed_abs, tag = 'smem constant byte address 0x4 - core index']
  #allocation1 [shape = 'u32[144,128]{1,0:T(1,128)}', space=vmem, size = 0x12000, scoped, tag = 'internal scratch']
  #allocation2 [shape = 'f32[1,1]{1,0:T(1,128)S(1)}', space=vmem, size = 0x200, scoped, tag = 'scoped memory for tpu_custom_call.1']
  %s0 = inlined_call_operand.hbm [shape: f32[2,8,32], index: 0, kind: input, shape index: {}]
  %s1 = inlined_call_operand.vmem [shape: f32[1,32], index: 1, kind: input, shape index: {}]
  %s2 = inlined_call_operand.vmem [shape: f32[32,32], index: 2, kind: input, shape index: {}]
  %s3 = inlined_call_operand.vmem [shape: f32[1,32], index: 3, kind: input, shape index: {}]
  %s4 = inlined_call_operand.vmem [shape: f32[32,1], index: 4, kind: input, shape index: {}]
  %s5 = inlined_call_operand.<no memory space> [shape: f32[1,1], index: 5, kind: input, shape index: {}]
  %s6 = inlined_call_operand.vmem [shape: f32[2,1], index: 6, kind: output, shape index: {0}]
  %s7 = inlined_call_operand.hbm [shape: f32[2,8], index: 7, kind: output, shape index: {1}]
  %8 = xla_tuple %s6, %s7
  %s9 = sld [smem:[#allocation0]]
  $region46: #{tpu_custom_call.1} parent=0
    _
  %s11 = ssub.s32 1, %s9
  %s12 = scalar_select 0, %s11, %s9
  %v13 = vstv %s5
  %14 = vst [vmem:[#allocation2] sm:$0x1] %v13
  $region1: #{tpu_custom_call.1} parent=0
    #allocation3 [shape = 'u8[8192]{0}', space=vmem, size = 0x2000, scoped, tag = 'input window, operand 0, single buffered']
    #allocation4 [shape = 's32[1]{0}', space=sflag, size = 0x4, scoped, tag = 'scoped memory for tpu_custom_call.1']
    #allocation5 [shape = 's32[1]{0}', space=sflag, size = 0x4, scoped, tag = 'scoped memory for tpu_custom_call.1']
    #allocation6 [shape = 'u8[1024]{0}', space=vmem, size = 0x400, scoped, tag = 'output window, operand 1, single buffered']
    %15 = vsyncpa [#allocation4], 0
    %16 = vsyncpa [#allocation5], 0
    // Predicated region
    $region2: #{tpu_custom_call.1} parent=1 // pred_check
      _
    $region3: #{tpu_custom_call.1} parent=1 // pred_check_branch
      %18 = sbr.rel (0) target = $region5
    $region4: #{tpu_custom_call.1} parent=1 // pred_region
      %s20 = ssub.s32 256, 256
      %21 = vsyncadd [#allocation4], %s20
      %s22 = sshll.u32 [#allocation3], 4
      %s23 = int_to_ptr.vmem [resolvable:$true] %s22
      %28 = dma.hbm_to_vmem [thread:$0]  %s0, 256, %s23, [#allocation4], 128, 128, 8
    $region5: #{tpu_custom_call.1} parent=1 // pred_fallthru
      _
    // Predicated region
    $region6: #{tpu_custom_call.1} parent=1 // pred_check
      _
    $region7: #{tpu_custom_call.1} parent=1 // pred_check_branch
      %30 = sbr.rel (0) target = $region9
    $region8: #{tpu_custom_call.1} parent=1 // pred_region
      _
    $region9: #{tpu_custom_call.1} parent=1 // pred_fallthru
      _
    // Predicated region
    $region10: #{tpu_custom_call.1} parent=1 // pred_check
      _
    $region11: #{tpu_custom_call.1} parent=1 // pred_check_branch
      %32 = sbr.rel (0) target = $region13
    $region12: #{tpu_custom_call.1} parent=1 // pred_region
      _
    $region13: #{tpu_custom_call.1} parent=1 // pred_fallthru
      _
    // Predicated region
    $region14: #{tpu_custom_call.1} parent=1 // pred_check
      _
    $region15: #{tpu_custom_call.1} parent=1 // pred_check_branch
      %34 = sbr.rel (0) target = $region17
    $region16: #{tpu_custom_call.1} parent=1 // pred_region
      _
    $region17: #{tpu_custom_call.1} parent=1 // pred_fallthru
      _
    // Predicated region
    $region18: #{tpu_custom_call.1} parent=1 // pred_check
      _
    $region19: #{tpu_custom_call.1} parent=1 // pred_check_branch
      %36 = sbr.rel (0) target = $region21
    $region20: #{tpu_custom_call.1} parent=1 // pred_region
      _
    $region21: #{tpu_custom_call.1} parent=1 // pred_fallthru
      _
    // Predicated region
    $region22: #{tpu_custom_call.1} parent=1 // pred_check
      _
    $region23: #{tpu_custom_call.1} parent=1 // pred_check_branch
      %38 = sbr.rel (0) target = $region25
    $region24: #{tpu_custom_call.1} parent=1 // pred_region
      _
    $region25: #{tpu_custom_call.1} parent=1 // pred_fallthru
      _
    // Predicated region
    $region26: #{tpu_custom_call.1} parent=1 // pred_check
      _
    $region27: #{tpu_custom_call.1} parent=1 // pred_check_branch
      %40 = sbr.rel (0) target = $region29
    $region28: #{tpu_custom_call.1} parent=1 // pred_region
      %41 = dma.done [#allocation4], 256
    $region29: #{tpu_custom_call.1} parent=1 // pred_fallthru
      _
    %v42 = vld [vmem:[#allocation3] sm:$0xff]
    %v43 = vld [vmem:[#allocation3 + $0x8] sm:$0xff]
    %v44 = vld [vmem:[%s1] sm:$0x1]
    %v46 = vlaneseq
    %v47 = vshrl.u32 %v46, 7
    %v48 = vsub.s32 0, %v47
    %v49 = vrot.slane %v44, %v48
    %v51 = vmul.f32 %v42, %v49
    %v52 = vmul.f32 %v43, %v49
    %vm53 = vcmask 261120
    %v54 = vsel %vm53, %v51, 0.0
    %55 = vadd.xlane.f32.xlu0 %v54
    %v56 = vpop.xlane.xlu0 %55
    %v57 = vsel %vm53, %v52, 0.0
    %58 = vadd.xlane.f32.xlu0 %v57
    %v59 = vpop.xlane.xlu0 %58
    %v62 = vlaneseq
    %v63 = vand.u32 %v62, 127
    %v64 = vlaneseq
    %v65 = vshrl.u32 %v64, 7
    %v66 = vsub.s32 %v63, %v65
    %v67 = vrot.slane %v56, %v66
    %v68 = vlaneseq
    %v69 = vshrl.u32 %v68, 7
    %v70 = vsub.s32 %v63, %v69
    %v71 = vrot.slane %v59, %v70
    %vm72 = vcmask 1041409
    %v73 = vsel %vm72, %v71, %v67
    %vm75 = vcmask 58368
    %v76 = vsel %vm75, %v73, -inf
    %77 = vmax.xlane.f32.xlu0 %v76
    %v78 = vpop.xlane.xlu0 %77
    %v80 = vlaneseq
    %v81 = vshrl.u32 %v80, 7
    %v82 = vsub.s32 0, %v81
    %v83 = vrot.slane %v78, %v82
    %v84 = vlaneseq
    %v85 = vshrl.u32 %v84, 7
    %v86 = vsub.s32 1, %v85
    %v87 = vrot.slane %v78, %v86
    %v90 = vsub.f32 %v56, %v83
    %v91 = vsub.f32 %v59, %v87
    %v92 = vmul.f32 %v90, 1.442695
    %v93 = vpow.pop %v92
    %v94 = vmul.f32 %v91, 1.442695
    %v95 = vpow.pop %v94
    %98 = vset.pattern.permute.xlu0 0
    %99 = vperm.xlu0 %98, %v93
    %v100 = vpop.permute.xlu0 %99
    %101 = vset.pattern.permute.xlu0 0
    %102 = vperm.xlu0 %101, %v95
    %v103 = vpop.permute.xlu0 %102
    %v104 = vlaneseq
    %v105 = vshrl.u32 %v104, 7
    %v106 = vsub.s32 %v63, %v105
    %v107 = vrot.slane %v100, %v106
    %v108 = vlaneseq
    %v109 = vshrl.u32 %v108, 7
    %v110 = vsub.s32 %v63, %v109
    %v111 = vrot.slane %v103, %v110
    %v112 = vsel %vm72, %v111, %v107
    %v114 = vsel %vm75, %v112, 0.0
    %115 = vadd.xlane.f32.xlu0 %v114
    %v116 = vpop.xlane.xlu0 %115
    %v117 = vrcp.pop %v116
    %v118 = vmul.f32 %v116, %v117
    %v119 = vsub.f32 2.0, %v118
    %v120 = vmul.f32 %v117, %v119
    %v122 = vlaneseq
    %v123 = vshrl.u32 %v122, 7
    %v124 = vsub.s32 0, %v123
    %v125 = vrot.slane %v120, %v124
    %v126 = vlaneseq
    %v127 = vshrl.u32 %v126, 7
    %v128 = vsub.s32 1, %v127
    %v129 = vrot.slane %v120, %v128
    %v132 = vmul.f32 %v93, %v125
    %v133 = vmul.f32 %v95, %v129
    %135 = vset.pattern.permute.xlu0 0
    %136 = vperm.xlu0 %135, %v132
    %v137 = vpop.permute.xlu0 %136
    %140 = vset.pattern.permute.xlu0 0
    %141 = vperm.xlu0 %140, %v133
    %v142 = vpop.permute.xlu0 %141
    %v144 = vmul.f32 %v137, %v42
    %v145 = vmul.f32 %v142, %v43
    %v146 = vsel %vm53, %v144, 0.0
    %v147 = vrot.slane %v146, 4
    %v148 = vadd.f32 %v146, %v147
    %v149 = vrot.slane %v148, 2
    %v150 = vadd.f32 %v148, %v149
    %v151 = vrot.slane %v150, 1
    %v152 = vadd.f32 %v150, %v151
    %v153 = vsel %vm53, %v145, 0.0
    %v154 = vrot.slane %v153, 4
    %v155 = vadd.f32 %v153, %v154
    %v156 = vrot.slane %v155, 2
    %v157 = vadd.f32 %v155, %v156
    %v158 = vrot.slane %v157, 1
    %v159 = vadd.f32 %v157, %v158
    %v160 = vld [vmem:[%s2] sm:$0xff]
    %v161 = vld [vmem:[%s2 + $0x8] sm:$0xff]
    %v162 = vld [vmem:[%s2 + $0x10] sm:$0xff]
    %v163 = vld [vmem:[%s2 + $0x18] sm:$0xff]
    %v164 = vld [vmem:[%s3] sm:$0x1]
    %v166 = vlaneseq
    %v167 = vshrl.u32 %v166, 7
    %v168 = vsub.s32 0, %v167
    %v169 = vrot.slane %v164, %v168
    %v173 = vsel %vm72, %v159, %v152
    %v174 = vsel %vm53, %v173, 0
    %176 = vmatprep.subr.mxu0 0.0
    %177 = vmatpush1.msra.mxu0 %v160
    %178 = vmatprep.subr.mxu0 0.0
    %179 = vmatpush1.msra.mxu0 %v161
    %180 = vmatprep.subr.mxu0 0.0
    %181 = vmatpush1.msra.mxu0 %v162
    %182 = vmatprep.subr.mxu0 0.0
    %183 = vmatpush1.msra.mxu0 %v163
    %184 = vmatprep.subr.mxu0 0.0
    %185 = vmatpush1.msra.mxu0 0.0
    %186 = vmatprep.subr.mxu0 0.0
    %187 = vmatpush1.msra.mxu0 0.0
    %188 = vmatprep.subr.mxu0 0.0
    %189 = vmatpush1.msra.mxu0 0.0
    %190 = vmatprep.subr.mxu0 0.0
    %191 = vmatpush1.msra.mxu0 0.0
    %192 = vmatprep.subr.mxu0 0.0
    %193 = vmatpush1.msra.mxu0 0.0
    %194 = vmatprep.subr.mxu0 0.0
    %195 = vmatpush1.msra.mxu0 0.0
    %196 = vmatprep.subr.mxu0 0.0
    %197 = vmatpush1.msra.mxu0 0.0
    %198 = vmatprep.subr.mxu0 0.0
    %199 = vmatpush1.msra.mxu0 0.0
    %200 = vmatprep.subr.mxu0 0.0
    %201 = vmatpush1.msra.mxu0 0.0
    %202 = vmatprep.subr.mxu0 0.0
    %203 = vmatpush1.msra.mxu0 0.0
    %204 = vmatprep.subr.mxu0 0.0
    %205 = vmatpush1.msra.mxu0 0.0
    %206 = vmatprep.subr.mxu0 0.0
    %207 = vmatpush1.msra.mxu0 0.0
    %208 = vmatprep.subr.mxu0 0.0
    %209 = vmatpush1.msra.mxu0 0.0
    %210 = vmatprep.subr.mxu0 0.0
    %211 = vmatpush1.msra.mxu0 0.0
    %212 = vmatprep.subr.mxu0 0.0
    %213 = vmatpush1.msra.mxu0 0.0
    %214 = vmatprep.subr.mxu0 0.0
    %215 = vmatpush1.msra.mxu0 0.0
    %216 = vmatprep.subr.mxu0 0.0
    %217 = vmatpush1.msra.mxu0 0.0
    %218 = vmatprep.subr.mxu0 0.0
    %219 = vmatpush1.msra.mxu0 0.0
    %220 = vmatprep.subr.mxu0 0.0
    %221 = vmatpush1.msra.mxu0 0.0
    %222 = vmatprep.subr.mxu0 0.0
    %223 = vmatpush1.msra.mxu0 0.0
    %224 = vmatprep.subr.mxu0 0.0
    %225 = vmatpush1.msra.mxu0 0.0
    %226 = vmatprep.subr.mxu0 0.0
    %227 = vmatpush1.msra.mxu0 0.0
    %228 = vmatprep.subr.mxu0 0.0
    %229 = vmatpush1.msra.mxu0 0.0
    %230 = vmatprep.subr.mxu0 0.0
    %231 = vmatpush1.msra.mxu0 0.0
    %232 = vmatprep.subr.mxu0 0.0
    %233 = vmatpush1.msra.mxu0 0.0
    %234 = vmatprep.subr.mxu0 0.0
    %235 = vmatpush1.msra.mxu0 0.0
    %236 = vmatprep.subr.mxu0 0.0
    %237 = vmatpush1.msra.mxu0 0.0
    %238 = vmatprep.subr.mxu0 0.0
    %239 = vmatpush1.msra.mxu0 0.0
    %240 = vmatprep.mubr.f32.mxu0 0.0
    %241 = vmatmul.mubr.f32.gmra.mrb[0].mxu0 %v174
    %v242 = vpop.f32.mrb[0].mxu0
    %v243 = vadd.f32 %v169, %v242
    %v244 = vpop.f32.mrb[0].mxu0
    %245 = vdwg.mxu0
    %v246 = vmax.f32 %v243, 0.0
    %v247 = vld [vmem:[%s4] sm:$0xff]
    %v248 = vld [vmem:[%s4 + $0x8] sm:$0xff]
    %v249 = vld [vmem:[%s4 + $0x10] sm:$0xff]
    %v250 = vld [vmem:[%s4 + $0x18] sm:$0xff]
    %v251 = vld [vmem:[#allocation2] sm:$0x1]
    %v253 = vlaneseq
    %v254 = vshrl.u32 %v253, 7
    %v255 = vsub.s32 0, %v254
    %v256 = vrot.slane %v251, %v255
    %v259 = vsel %vm53, %v246, 0
    %261 = vmatprep.subr.mxu0 0.0
    %262 = vmatpush1.msra.mxu0 %v247
    %263 = vmatprep.subr.mxu0 0.0
    %264 = vmatpush1.msra.mxu0 %v248
    %265 = vmatprep.subr.mxu0 0.0
    %266 = vmatpush1.msra.mxu0 %v249
    %267 = vmatprep.subr.mxu0 0.0
    %268 = vmatpush1.msra.mxu0 %v250
    %269 = vmatprep.subr.mxu0 0.0
    %270 = vmatpush1.msra.mxu0 0.0
    %271 = vmatprep.subr.mxu0 0.0
    %272 = vmatpush1.msra.mxu0 0.0
    %273 = vmatprep.subr.mxu0 0.0
    %274 = vmatpush1.msra.mxu0 0.0
    %275 = vmatprep.subr.mxu0 0.0
    %276 = vmatpush1.msra.mxu0 0.0
    %277 = vmatprep.subr.mxu0 0.0
    %278 = vmatpush1.msra.mxu0 0.0
    %279 = vmatprep.subr.mxu0 0.0
    %280 = vmatpush1.msra.mxu0 0.0
    %281 = vmatprep.subr.mxu0 0.0
    %282 = vmatpush1.msra.mxu0 0.0
    %283 = vmatprep.subr.mxu0 0.0
    %284 = vmatpush1.msra.mxu0 0.0
    %285 = vmatprep.subr.mxu0 0.0
    %286 = vmatpush1.msra.mxu0 0.0
    %287 = vmatprep.subr.mxu0 0.0
    %288 = vmatpush1.msra.mxu0 0.0
    %289 = vmatprep.subr.mxu0 0.0
    %290 = vmatpush1.msra.mxu0 0.0
    %291 = vmatprep.subr.mxu0 0.0
    %292 = vmatpush1.msra.mxu0 0.0
    %293 = vmatprep.subr.mxu0 0.0
    %294 = vmatpush1.msra.mxu0 0.0
    %295 = vmatprep.subr.mxu0 0.0
    %296 = vmatpush1.msra.mxu0 0.0
    %297 = vmatprep.subr.mxu0 0.0
    %298 = vmatpush1.msra.mxu0 0.0
    %299 = vmatprep.subr.mxu0 0.0
    %300 = vmatpush1.msra.mxu0 0.0
    %301 = vmatprep.subr.mxu0 0.0
    %302 = vmatpush1.msra.mxu0 0.0
    %303 = vmatprep.subr.mxu0 0.0
    %304 = vmatpush1.msra.mxu0 0.0
    %305 = vmatprep.subr.mxu0 0.0
    %306 = vmatpush1.msra.mxu0 0.0
    %307 = vmatprep.subr.mxu0 0.0
    %308 = vmatpush1.msra.mxu0 0.0
    %309 = vmatprep.subr.mxu0 0.0
    %310 = vmatpush1.msra.mxu0 0.0
    %311 = vmatprep.subr.mxu0 0.0
    %312 = vmatpush1.msra.mxu0 0.0
    %313 = vmatprep.subr.mxu0 0.0
    %314 = vmatpush1.msra.mxu0 0.0
    %315 = vmatprep.subr.mxu0 0.0
    %316 = vmatpush1.msra.mxu0 0.0
    %317 = vmatprep.subr.mxu0 0.0
    %318 = vmatpush1.msra.mxu0 0.0
    %319 = vmatprep.subr.mxu0 0.0
    %320 = vmatpush1.msra.mxu0 0.0
    %321 = vmatprep.subr.mxu0 0.0
    %322 = vmatpush1.msra.mxu0 0.0
    %323 = vmatprep.subr.mxu0 0.0
    %324 = vmatpush1.msra.mxu0 0.0
    %325 = vmatprep.mubr.f32.mxu0 0.0
    %326 = vmatmul.mubr.f32.gmra.mrb[0].mxu0 %v259
    %v327 = vpop.f32.mrb[0].mxu0
    %v328 = vadd.f32 %v256, %v327
    %v329 = vpop.f32.mrb[0].mxu0
    %330 = vdwg.mxu0
    %vm331 = vcmask 1024
    %332 = vst.msk [vmem:[%s6] sm:$0x3] %vm331, %v328
    %v333 = vlaneseq
    %v334 = vshrl.u32 %v333, 7
    %v335 = vsub.s32 %v63, %v334
    %v336 = vrot.slane %v137, %v335
    %v337 = vlaneseq
    %v338 = vshrl.u32 %v337, 7
    %v339 = vsub.s32 %v63, %v338
    %v340 = vrot.slane %v142, %v339
    %v341 = vsel %vm72, %v340, %v336
    %343 = vst.msk [vmem:[#allocation6] sm:$0x3] %vm75, %v341
    // Predicated region
    $region30: #{tpu_custom_call.1} parent=1 // pred_check
      _
    $region31: #{tpu_custom_call.1} parent=1 // pred_check_branch
      %345 = sbr.rel (0) target = $region33
    $region32: #{tpu_custom_call.1} parent=1 // pred_region
      _
    $region33: #{tpu_custom_call.1} parent=1 // pred_fallthru
      _
    // Predicated region
    $region34: #{tpu_custom_call.1} parent=1 // pred_check
      _
    $region35: #{tpu_custom_call.1} parent=1 // pred_check_branch
      %347 = sbr.rel (0) target = $region37
    $region36: #{tpu_custom_call.1} parent=1 // pred_region
      %s349 = ssub.s32 32, 32
      %350 = vsyncadd [#allocation5], %s349
      %s352 = sshll.u32 [#allocation6], 4
      %s353 = int_to_ptr.vmem [resolvable:$true] %s352
      %355 = dma.vmem_to_hbm [thread:$0]  %s353, 32, %s7, [#allocation5]
    $region37: #{tpu_custom_call.1} parent=1 // pred_fallthru
      _
    // Predicated region
    $region38: #{tpu_custom_call.1} parent=1 // pred_check
      _
    $region39: #{tpu_custom_call.1} parent=1 // pred_check_branch
      %357 = sbr.rel (0) target = $region41
    $region40: #{tpu_custom_call.1} parent=1 // pred_region
      _
    $region41: #{tpu_custom_call.1} parent=1 // pred_fallthru
      _
    // Predicated region
    $region42: #{tpu_custom_call.1} parent=1 // pred_check
      _
    $region43: #{tpu_custom_call.1} parent=1 // pred_check_branch
      %359 = sbr.rel (0) target = $region45
    $region44: #{tpu_custom_call.1} parent=1 // pred_region
      %360 = dma.done [#allocation5], 32
    $region45: #{tpu_custom_call.1} parent=1 // pred_fallthru
      _
    %361 = vsyncpa [#allocation4], 1
    %362 = vsyncpa [#allocation5], 1

</llo_original>
